<compile_context>
chip_gen: v7x
topology: tpu7x:2x2x1
jax: 0.10.0
libtpu: 0.0.40
codegen_flags: <defaults>
</compile_context>

<pallas_src>
import math
from functools import partial

import jax
import jax.numpy as jnp
from jax.experimental import pallas as pl
from jax.experimental.pallas import tpu as pltpu


def _default_vmem_limit():
    """Generation-aware scoped-VMEM budget (leave headroom for double buffers)."""
    try:
        cap = int(pltpu.get_tpu_info().vmem_capacity_bytes)
    except Exception:
        return 48 * 1024 * 1024
    if cap <= 64 * 1024 * 1024:          # v7x-class: 64 MiB physical
        return 48 * 1024 * 1024
    return 100 * 1024 * 1024             # v5e / v6e: 128 MiB physical


_VMEM_LIMIT = _default_vmem_limit()


def _round_up(x, m):
    return ((x + m - 1) // m) * m


def _pick_tile(dim, target, base=128, pref=256):
    """Largest tile <= target dividing dim, preferring multiples of `pref`
    (256 keeps both MXU halves fed on v6e/v7x), then multiples of `base`;
    falls back to the full dim (always a legal block)."""
    if dim <= target:
        return dim
    t = (target // pref) * pref
    while t >= pref:
        if dim % t == 0:
            return t
        t -= pref
    t = (target // base) * base
    while t >= base:
        if dim % t == 0:
            return t
        t -= base
    return dim


def _choose_tm(m, target=512):
    """Row-tile: 512 for large M, else M rounded up to 16 (bf16 sublane packing)."""
    if m >= target:
        return target
    return max(16, _round_up(m, 16))


def _pad_rows(a, multiple):
    m = a.shape[0]
    mp = _round_up(m, multiple)
    if mp == m:
        return a
    return jnp.pad(a, ((0, mp - m), (0, 0)))


def _gelu(x):
    # tanh approximation of GELU (BERT activation).
    return 0.5 * x * (1.0 + jnp.tanh(0.7978845608028654 * (x + 0.044715 * x * x * x)))


# --------------------- tiled linear (bf16 MXU, f32 accumulate), optional GELU ---------------------

def _linear_kernel(x_ref, w_ref, b_ref, o_ref, acc_ref, *, act):
    @pl.when(pl.program_id(2) == 0)
    def _():
        acc_ref[...] = jnp.zeros_like(acc_ref)

    acc_ref[...] += jnp.dot(x_ref[...], w_ref[...], preferred_element_type=jnp.float32)

    @pl.when(pl.program_id(2) == pl.num_programs(2) - 1)
    def _():
        y = acc_ref[...] + b_ref[...]
        if act == "gelu":
            # NOTE: per-element tanh epilogue is an EUP tail on v6e/v7x; amortized by
            # the large (tm x tn) output tile per K-sweep.
            y = _gelu(y)
        elif act == "tanh":
            y = jnp.tanh(y)
        o_ref[...] = y.astype(o_ref.dtype)


# ------------- tiled linear with fused residual-add + LayerNorm epilogue (tn = full N) -------------

def _linear_res_ln_kernel(x_ref, w_ref, b_ref, r_ref, g_ref, bb_ref, o_ref, acc_ref, *, eps):
    @pl.when(pl.program_id(1) == 0)
    def _():
        acc_ref[...] = jnp.zeros_like(acc_ref)

    acc_ref[...] += jnp.dot(x_ref[...], w_ref[...], preferred_element_type=jnp.float32)

    @pl.when(pl.program_id(1) == pl.num_programs(1) - 1)
    def _():
        y = acc_ref[...] + b_ref[...] + r_ref[...].astype(jnp.float32)
        mu = jnp.mean(y, axis=-1, keepdims=True)
        var = jnp.mean((y - mu) ** 2, axis=-1, keepdims=True)
        o_ref[...] = ((y - mu) * jax.lax.rsqrt(var + eps) * g_ref[...]
                      + bb_ref[...]).astype(o_ref.dtype)


def linear(x, w, b, act=None, residual=None, ln_g=None, ln_b=None, ln_eps=1e-12,
           out_dtype=jnp.bfloat16):
    """y = act(x @ w + b) or LayerNorm(x @ w + b + residual); x:(M,K), w:(K,N)."""
    M, K = x.shape
    N = w.shape[1]
    x = x.astype(jnp.bfloat16)
    w = w.astype(jnp.bfloat16)
    b2 = b.astype(jnp.float32).reshape(1, N)

    tm = _choose_tm(M)
    xp = _pad_rows(x, tm)
    Mp = xp.shape[0]
    tk = _pick_tile(K, 512)

    if residual is not None:
        # Fused residual + LayerNorm epilogue: the whole N row lives in one tile.
        rp = _pad_rows(residual.astype(jnp.bfloat16), tm)
        g2 = ln_g.astype(jnp.float32).reshape(1, N)
        bb2 = ln_b.astype(jnp.float32).reshape(1, N)
        out = pl.pallas_call(
            partial(_linear_res_ln_kernel, eps=ln_eps),
            out_shape=jax.ShapeDtypeStruct((Mp, N), out_dtype),
            grid=(Mp // tm, K // tk),
            in_specs=[pl.BlockSpec((tm, tk), lambda i, k: (i, k)),
                      pl.BlockSpec((tk, N), lambda i, k: (k, 0)),
                      pl.BlockSpec((1, N), lambda i, k: (0, 0)),
                      pl.BlockSpec((tm, N), lambda i, k: (i, 0)),
                      pl.BlockSpec((1, N), lambda i, k: (0, 0)),
                      pl.BlockSpec((1, N), lambda i, k: (0, 0))],
            out_specs=pl.BlockSpec((tm, N), lambda i, k: (i, 0)),
            scratch_shapes=[pltpu.VMEM((tm, N), jnp.float32)],
            compiler_params=pltpu.CompilerParams(
                dimension_semantics=("parallel", "arbitrary"),
                vmem_limit_bytes=_VMEM_LIMIT),
        )(xp, w, b2, rp, g2, bb2)
    else:
        tn = _pick_tile(N, 768)
        out = pl.pallas_call(
            partial(_linear_kernel, act=act),
            out_shape=jax.ShapeDtypeStruct((Mp, N), out_dtype),
            grid=(Mp // tm, N // tn, K // tk),
            in_specs=[pl.BlockSpec((tm, tk), lambda i, j, k: (i, k)),
                      pl.BlockSpec((tk, tn), lambda i, j, k: (k, j)),
                      pl.BlockSpec((1, tn), lambda i, j, k: (0, j))],
            out_specs=pl.BlockSpec((tm, tn), lambda i, j, k: (i, j)),
            scratch_shapes=[pltpu.VMEM((tm, tn), jnp.float32)],
            compiler_params=pltpu.CompilerParams(
                dimension_semantics=("parallel", "parallel", "arbitrary"),
                vmem_limit_bytes=_VMEM_LIMIT),
        )(xp, w, b2)

    return out[:M] if Mp != M else out


# ----------------------------- row-tiled LayerNorm (embeddings only) -----------------------------

def _ln_kernel(x_ref, g_ref, b_ref, o_ref, *, eps):
    x = x_ref[...].astype(jnp.float32)
    mu = jnp.mean(x, axis=-1, keepdims=True)
    var = jnp.mean((x - mu) ** 2, axis=-1, keepdims=True)
    o_ref[...] = ((x - mu) * jax.lax.rsqrt(var + eps) * g_ref[...] + b_ref[...]).astype(o_ref.dtype)


def layernorm(x, g, b, eps=1e-12, out_dtype=jnp.bfloat16):
    """Row-wise LayerNorm over the last dim; x:(M,H)."""
    M, H = x.shape
    tm = _choose_tm(M)
    xp = _pad_rows(x, tm)
    Mp = xp.shape[0]
    g2 = g.astype(jnp.float32).reshape(1, H)
    b2 = b.astype(jnp.float32).reshape(1, H)
    out = pl.pallas_call(
        partial(_ln_kernel, eps=eps),
        out_shape=jax.ShapeDtypeStruct((Mp, H), out_dtype),
        grid=(Mp // tm,),
        in_specs=[pl.BlockSpec((tm, H), lambda i: (i, 0)),
                  pl.BlockSpec((1, H), lambda i: (0, 0)),
                  pl.BlockSpec((1, H), lambda i: (0, 0))],
        out_specs=pl.BlockSpec((tm, H), lambda i: (i, 0)),
        compiler_params=pltpu.CompilerParams(
            dimension_semantics=("parallel",),
            vmem_limit_bytes=_VMEM_LIMIT),
    )(xp, g2, b2)
    return out[:M] if Mp != M else out


# --------------- flash-style multi-head attention on a (B, heads, q, kv) grid ---------------

def _flash_attn_kernel(q_ref, k_ref, v_ref, mb_ref, o_ref, m_sc, l_sc, acc_sc, *, scale):
    kv = pl.program_id(3)

    @pl.when(kv == 0)
    def _():
        m_sc[...] = jnp.full_like(m_sc, -1e30)
        l_sc[...] = jnp.zeros_like(l_sc)
        acc_sc[...] = jnp.zeros_like(acc_sc)

    q = q_ref[0, 0, 0]                      # (tq, Dh) bf16
    k = k_ref[0, 0, 0]                      # (tkv, Dh) bf16
    v = v_ref[0, 0, 0]                      # (tkv, Dh) bf16

    s = jax.lax.dot_general(q, k, (((1,), (1,)), ((), ())),
                            preferred_element_type=jnp.float32) * scale
    s = s + mb_ref[0]                       # (1, tkv) additive mask bias, broadcasts over rows

    m_new = jnp.maximum(m_sc[...], jnp.max(s, axis=-1, keepdims=True))
    alpha = jnp.exp(m_sc[...] - m_new)
    p = jnp.exp(s - m_new)
    l_sc[...] = alpha * l_sc[...] + jnp.sum(p, axis=-1, keepdims=True)
    acc_sc[...] = alpha * acc_sc[...] + jnp.dot(p.astype(v.dtype), v,
                                                preferred_element_type=jnp.float32)
    m_sc[...] = m_new

    @pl.when(kv == pl.num_programs(3) - 1)
    def _():
        o_ref[0, 0] = (acc_sc[...] *
                       pl.reciprocal(l_sc[...], approx=True)).astype(o_ref.dtype)


def attention(qkv5, mask_bias):
    """qkv5: (3, B, nH, S, Dh) bf16; mask_bias: (B, 1, S) f32 -> (B, nH, S, Dh) bf16."""
    _, B, nH, S, Dh = qkv5.shape
    scale = 1.0 / math.sqrt(Dh)
    tq = _pick_tile(S, 256, base=128, pref=256)
    tkv = _pick_tile(S, 256, base=128, pref=256)
    return pl.pallas_call(
        partial(_flash_attn_kernel, scale=scale),
        out_shape=jax.ShapeDtypeStruct((B, nH, S, Dh), jnp.bfloat16),
        grid=(B, nH, S // tq, S // tkv),
        in_specs=[
            pl.BlockSpec((1, 1, 1, tq, Dh), lambda b, h, qi, kv: (0, b, h, qi, 0)),
            pl.BlockSpec((1, 1, 1, tkv, Dh), lambda b, h, qi, kv: (1, b, h, kv, 0)),
            pl.BlockSpec((1, 1, 1, tkv, Dh), lambda b, h, qi, kv: (2, b, h, kv, 0)),
            pl.BlockSpec((1, 1, tkv), lambda b, h, qi, kv: (b, 0, kv)),
        ],
        out_specs=pl.BlockSpec((1, 1, tq, Dh), lambda b, h, qi, kv: (b, h, qi, 0)),
        scratch_shapes=[pltpu.VMEM((tq, 1), jnp.float32),
                        pltpu.VMEM((tq, 1), jnp.float32),
                        pltpu.VMEM((tq, Dh), jnp.float32)],
        compiler_params=pltpu.CompilerParams(
            dimension_semantics=("parallel", "parallel", "parallel", "arbitrary"),
            vmem_limit_bytes=_VMEM_LIMIT),
    )(qkv5, qkv5, qkv5, mask_bias)


# -------------------------- fused pooler (tanh) + classification fc --------------------------

def _pooler_fc_kernel(cls_ref, wp_ref, bp_ref, wfc_ref, bfc_ref, o_ref):
    pooled = jnp.tanh(
        jnp.dot(cls_ref[...], wp_ref[...], preferred_element_type=jnp.float32) + bp_ref[...])
    logits = jnp.dot(pooled.astype(jnp.bfloat16), wfc_ref[...],
                     preferred_element_type=jnp.float32) + bfc_ref[...]
    o_ref[...] = logits


def pooler_fc(cls, wp, bp, wfc, bfc):
    """logits = tanh(cls @ wp + bp) @ wfc + bfc; cls:(B,H)."""
    B, H = cls.shape
    C = wfc.shape[1]
    return pl.pallas_call(
        _pooler_fc_kernel,
        out_shape=jax.ShapeDtypeStruct((B, C), jnp.float32),
        grid=(1,),
        in_specs=[pl.BlockSpec((B, H), lambda i: (0, 0)),
                  pl.BlockSpec((H, H), lambda i: (0, 0)),
                  pl.BlockSpec((1, H), lambda i: (0, 0)),
                  pl.BlockSpec((H, C), lambda i: (0, 0)),
                  pl.BlockSpec((1, C), lambda i: (0, 0))],
        out_specs=pl.BlockSpec((B, C), lambda i: (0, 0)),
        compiler_params=pltpu.CompilerParams(
            dimension_semantics=("arbitrary",),
            vmem_limit_bytes=_VMEM_LIMIT),
    )(cls.astype(jnp.bfloat16), wp.astype(jnp.bfloat16),
      bp.astype(jnp.float32).reshape(1, H),
      wfc.astype(jnp.bfloat16), bfc.astype(jnp.float32).reshape(1, C))


# ------------------------- Parameter init (synthetic, deterministic) -------------------------

def _dense_bf16(key, fan_in, fan_out):
    return (jax.random.normal(key, (fan_in, fan_out), jnp.float32) * 0.02).astype(jnp.bfloat16)


def init_params(key, *, vocab, max_pos, type_vocab, hidden, n_layers, n_heads,
                intermediate, num_classes):
    keys = iter(jax.random.split(key, 8 + 8 * n_layers))
    p = {
        "num_heads": n_heads,
        # embedding tables kept in bf16 (halves gather + first-LN HBM traffic)
        "word_emb": (jax.random.normal(next(keys), (vocab, hidden), jnp.float32) * 0.02
                     ).astype(jnp.bfloat16),
        "pos_emb": (jax.random.normal(next(keys), (max_pos, hidden), jnp.float32) * 0.02
                    ).astype(jnp.bfloat16),
        "type_emb": (jax.random.normal(next(keys), (type_vocab, hidden), jnp.float32) * 0.02
                     ).astype(jnp.bfloat16),
        "emb_ln_g": jnp.ones((hidden,), jnp.float32),
        "emb_ln_b": jnp.zeros((hidden,), jnp.float32),
        "layers": [],
    }
    for _ in range(n_layers):
        layer = {
            # fused Q/K/V projection: [H, 3H] weight, [3H] bias
            "wqkv": _dense_bf16(next(keys), hidden, 3 * hidden),
            "bqkv": jnp.zeros((3 * hidden,), jnp.float32),
            "wo": _dense_bf16(next(keys), hidden, hidden), "bo": jnp.zeros((hidden,), jnp.float32),
            "ln1_g": jnp.ones((hidden,), jnp.float32), "ln1_b": jnp.zeros((hidden,), jnp.float32),
            "w1": _dense_bf16(next(keys), hidden, intermediate),
            "b1": jnp.zeros((intermediate,), jnp.float32),
            "w2": _dense_bf16(next(keys), intermediate, hidden),
            "b2": jnp.zeros((hidden,), jnp.float32),
            "ln2_g": jnp.ones((hidden,), jnp.float32), "ln2_b": jnp.zeros((hidden,), jnp.float32),
        }
        p["layers"].append(layer)
    p["wp"] = _dense_bf16(next(keys), hidden, hidden)           # pooler dense
    p["bp"] = jnp.zeros((hidden,), jnp.float32)
    p["wfc"] = _dense_bf16(next(keys), hidden, num_classes)     # classification head (self.fc)
    p["bfc"] = jnp.zeros((num_classes,), jnp.float32)
    return p


# ------------------------- Model forward (mirrors Model.forward) -------------------------

def model_forward(params, x):
    """x = (context_ids, seq_len, mask) -> logits (B, num_classes)."""
    context = x[0]                 # (B, S) int32 token ids
    mask = x[2]                    # (B, S) attention mask
    B, S = context.shape
    H = params["word_emb"].shape[1]
    nH = params["num_heads"]
    Dh = H // nH

    token_type = jnp.zeros((B, S), jnp.int32)
    # embeddings (gather is plain-JAX glue, bf16 tables) + LayerNorm kernel
    emb = (params["word_emb"][context]
           + params["pos_emb"][:S][None, :, :]
           + params["type_emb"][token_type]).astype(jnp.bfloat16)
    h = layernorm(emb.reshape(B * S, H), params["emb_ln_g"], params["emb_ln_b"])   # (B*S,H) bf16

    # additive attention-mask bias, shape (B, 1, S), kept in f32 (softmax path stays f32)
    mask_bias = (1.0 - mask.astype(jnp.float32))[:, None, :] * -1e9

    for layer in params["layers"]:
        qkv = linear(h, layer["wqkv"], layer["bqkv"])                 # (B*S, 3H), fused QKV
        # present QKV as (3, B, nH, S, Dh) so attention BlockSpecs index (batch, head)
        qkv5 = qkv.reshape(B, S, 3, nH, Dh).transpose(2, 0, 3, 1, 4)
        ctx = attention(qkv5, mask_bias)                              # (B, nH, S, Dh)
        ctx2 = ctx.transpose(0, 2, 1, 3).reshape(B * S, H)            # (B*S, H)
        # wo projection with fused residual-add + LayerNorm epilogue
        h1 = linear(ctx2, layer["wo"], layer["bo"],
                    residual=h, ln_g=layer["ln1_g"], ln_b=layer["ln1_b"])
        ff = linear(h1, layer["w1"], layer["b1"], act="gelu")
        # w2 projection with fused residual-add + LayerNorm epilogue
        h = linear(ff, layer["w2"], layer["b2"],
                   residual=h1, ln_g=layer["ln2_g"], ln_b=layer["ln2_b"])

    # pooler: dense + tanh on the [CLS] token, fused with the classification fc
    cls = h.reshape(B, S, H)[:, 0, :]                                 # (B, H)
    logits = pooler_fc(cls, params["wp"], params["bp"], params["wfc"], params["bfc"])
    return logits


# TODO(synk): pretrained-checkpoint loading (BertModel.from_pretrained) has no Pallas
# equivalent; weights are synthetic and initialized deterministically in-script.
# (Dropout is a no-op in eval mode and is omitted; GELU uses the tanh approximation.)


if __name__ == "__main__":
    B, S = 2, 8
    H, nH, nL, I = 32, 2, 2, 64
    vocab, max_pos, type_vocab, num_classes = 100, 16, 2, 3

    root = jax.random.PRNGKey(0)
    k_param, k_ids = jax.random.split(root, 2)
    params = init_params(k_param, vocab=vocab, max_pos=max_pos, type_vocab=type_vocab,
                         hidden=H, n_layers=nL, n_heads=nH, intermediate=I,
                         num_classes=num_classes)

    context = jax.random.randint(k_ids, (B, S), 0, vocab, dtype=jnp.int32)
    seq_len = jnp.full((B,), S, dtype=jnp.int32)                   # unused (as in the module)
    mask = jnp.array([[1, 1, 1, 1, 1, 1, 1, 1],
                      [1, 1, 1, 1, 1, 0, 0, 0]], dtype=jnp.int32)
    x = (context, seq_len, mask)

    out = model_forward(params, x)
    jax.block_until_ready(out)
    assert out.shape == (B, num_classes)
    assert bool(jnp.all(jnp.isfinite(out)))
    print("KERNEL_OK")
</pallas_src>

<mosaic_0001>
module attributes {stable_mosaic.version = 11 : i64} {
  func.func @_ln_kernel(%arg0: i32, %arg1: memref<16x32xbf16, #tpu.memory_space<vmem>>, %arg2: memref<1x32xf32, #tpu.memory_space<vmem>>, %arg3: memref<1x32xf32, #tpu.memory_space<vmem>>, %arg4: memref<16x32xbf16, #tpu.memory_space<vmem>>) attributes {dimension_semantics = [#tpu.dimension_semantics<parallel>], iteration_bounds = array<i64: 1>, scalar_prefetch = 0 : i64, scratch_operands = 0 : i64, tpu.core_type = #tpu.core_type<tc>, window_params = [{transform_indices = @transform_0, window_bounds = array<i64: 16, 32>}, {pipeline_mode = #tpu.pipeline_mode<synchronous>, transform_indices = @transform_1, window_bounds = array<i64: 1, 32>}, {pipeline_mode = #tpu.pipeline_mode<synchronous>, transform_indices = @transform_2, window_bounds = array<i64: 1, 32>}, {transform_indices = @transform_3, window_bounds = array<i64: 16, 32>}]} {
    %c0 = arith.constant 0 : index
    %c0_0 = arith.constant 0 : index
    %0 = vector.load %arg1[%c0, %c0_0] : memref<16x32xbf16, #tpu.memory_space<vmem>>, vector<16x32xbf16>
    %1 = arith.extf %0 : vector<16x32xbf16> to vector<16x32xf32>
    %cst = arith.constant dense<0.000000e+00> : vector<16xf32>
    %2 = vector.multi_reduction <add>, %1, %cst [1] : vector<16x32xf32> to vector<16xf32>
    %3 = vector.shape_cast %2 : vector<16xf32> to vector<16x1xf32>
    %cst_1 = arith.constant 3.200000e+01 : f32
    %4 = vector.broadcast %cst_1 : f32 to vector<16x1xf32>
    %5 = arith.divf %3, %4 : vector<16x1xf32>
    %6 = vector.broadcast %5 : vector<16x1xf32> to vector<16x32xf32>
    %7 = arith.subf %1, %6 : vector<16x32xf32>
    %8 = arith.mulf %7, %7 : vector<16x32xf32>
    %cst_2 = arith.constant dense<0.000000e+00> : vector<16xf32>
    %9 = vector.multi_reduction <add>, %8, %cst_2 [1] : vector<16x32xf32> to vector<16xf32>
    %10 = vector.shape_cast %9 : vector<16xf32> to vector<16x1xf32>
    %cst_3 = arith.constant 3.200000e+01 : f32
    %11 = vector.broadcast %cst_3 : f32 to vector<16x1xf32>
    %12 = arith.divf %10, %11 : vector<16x1xf32>
    %13 = vector.broadcast %5 : vector<16x1xf32> to vector<16x32xf32>
    %14 = arith.subf %1, %13 : vector<16x32xf32>
    %cst_4 = arith.constant 9.99999996E-13 : f32
    %15 = vector.broadcast %cst_4 : f32 to vector<16x1xf32>
    %16 = arith.addf %12, %15 : vector<16x1xf32>
    %17 = math.rsqrt %16 : vector<16x1xf32>
    %18 = vector.broadcast %17 : vector<16x1xf32> to vector<16x32xf32>
    %19 = arith.mulf %14, %18 : vector<16x32xf32>
    %c0_5 = arith.constant 0 : index
    %c0_6 = arith.constant 0 : index
    %20 = vector.load %arg2[%c0_5, %c0_6] : memref<1x32xf32, #tpu.memory_space<vmem>>, vector<1x32xf32>
    %21 = vector.broadcast %20 : vector<1x32xf32> to vector<16x32xf32>
    %22 = arith.mulf %19, %21 : vector<16x32xf32>
    %c0_7 = arith.constant 0 : index
    %c0_8 = arith.constant 0 : index
    %23 = vector.load %arg3[%c0_7, %c0_8] : memref<1x32xf32, #tpu.memory_space<vmem>>, vector<1x32xf32>
    %24 = vector.broadcast %23 : vector<1x32xf32> to vector<16x32xf32>
    %25 = arith.addf %22, %24 : vector<16x32xf32>
    %26 = arith.truncf %25 : vector<16x32xf32> to vector<16x32xbf16>
    %c0_9 = arith.constant 0 : index
    %c0_10 = arith.constant 0 : index
    %27 = vector.load %arg4[%c0_9, %c0_10] : memref<16x32xbf16, #tpu.memory_space<vmem>>, vector<16x32xbf16>
    tpu.vector_store %arg4[%c0_9, %c0_10], %26 {strides = array<i32>} : memref<16x32xbf16, #tpu.memory_space<vmem>>, vector<16x32xbf16>,
    return
  }
  func.func @transform_0(%arg0: i32) -> (i32, i32) {
    %c0_i32 = arith.constant 0 : i32
    %c0_i32_0 = arith.constant 0 : i32
    return %arg0, %c0_i32 : i32, i32
  }
  func.func @transform_1(%arg0: i32) -> (i32, i32) {
    %c0_i32 = arith.constant 0 : i32
    %c0_i32_0 = arith.constant 0 : i32
    %c0_i32_1 = arith.constant 0 : i32
    return %c0_i32, %c0_i32_0 : i32, i32
  }
  func.func @transform_2(%arg0: i32) -> (i32, i32) {
    %c0_i32 = arith.constant 0 : i32
    %c0_i32_0 = arith.constant 0 : i32
    %c0_i32_1 = arith.constant 0 : i32
    return %c0_i32, %c0_i32_0 : i32, i32
  }
  func.func @transform_3(%arg0: i32) -> (i32, i32) {
    %c0_i32 = arith.constant 0 : i32
    %c0_i32_0 = arith.constant 0 : i32
    return %arg0, %c0_i32 : i32, i32
  }
}

</mosaic_0001>

<llo_original>
// kernel: tpu_custom_call.1
$region0: #{tpu_custom_call.1}
  #allocation0 [shape = 'u32[]', space=smem, size = 0x4, offset = 0x4, fixed_abs, tag = 'smem constant byte address 0x4 - core index']
  #allocation1 [shape = 'u32[144,128]{1,0:T(1,128)}', space=vmem, size = 0x12000, scoped, tag = 'internal scratch']
  %s0 = inlined_call_operand.hbm [shape: bf16[16,32], index: 0, kind: input, shape index: {}]
  %s1 = inlined_call_operand.vmem [shape: f32[1,32], index: 1, kind: input, shape index: {}]
  %s2 = inlined_call_operand.vmem [shape: f32[1,32], index: 2, kind: input, shape index: {}]
  %s3 = inlined_call_operand.hbm [shape: bf16[16,32], index: 3, kind: output, shape index: {}]
  %s4 = sld [smem:[#allocation0]]
  $region26: #{tpu_custom_call.1} parent=0
    _
  %s6 = ssub.s32 1, %s4
  %s7 = scalar_select 0, %s6, %s4
  $region1: #{tpu_custom_call.1} parent=0
    #allocation2 [shape = 'u8[4096]{0}', space=vmem, size = 0x1000, scoped, tag = 'input window, operand 0, single buffered']
    #allocation3 [shape = 's32[1]{0}', space=sflag, size = 0x4, scoped, tag = 'scoped memory for tpu_custom_call.1']
    #allocation4 [shape = 's32[1]{0}', space=sflag, size = 0x4, scoped, tag = 'scoped memory for tpu_custom_call.1']
    #allocation5 [shape = 'u8[4096]{0}', space=vmem, size = 0x1000, scoped, tag = 'output window, operand 0, single buffered']
    %8 = vsyncpa [#allocation3], 0
    %9 = vsyncpa [#allocation4], 0
    // Predicated region
    $region2: #{tpu_custom_call.1} parent=1 // pred_check
      _
    $region3: #{tpu_custom_call.1} parent=1 // pred_check_branch
      %11 = sbr.rel (0) target = $region5
    $region4: #{tpu_custom_call.1} parent=1 // pred_region
      %s13 = ssub.s32 128, 128
      %14 = vsyncadd [#allocation3], %s13
      %s15 = sshll.u32 [#allocation2], 4
      %s16 = int_to_ptr.vmem [resolvable:$true] %s15
      %21 = dma.hbm_to_vmem [thread:$0]  %s0, 128, %s16, [#allocation3], 64, 64, 4
    $region5: #{tpu_custom_call.1} parent=1 // pred_fallthru
      _
    // Predicated region
    $region6: #{tpu_custom_call.1} parent=1 // pred_check
      _
    $region7: #{tpu_custom_call.1} parent=1 // pred_check_branch
      %23 = sbr.rel (0) target = $region9
    $region8: #{tpu_custom_call.1} parent=1 // pred_region
      _
    $region9: #{tpu_custom_call.1} parent=1 // pred_fallthru
      _
    // Predicated region
    $region10: #{tpu_custom_call.1} parent=1 // pred_check
      _
    $region11: #{tpu_custom_call.1} parent=1 // pred_check_branch
      %25 = sbr.rel (0) target = $region13
    $region12: #{tpu_custom_call.1} parent=1 // pred_region
      _
    $region13: #{tpu_custom_call.1} parent=1 // pred_fallthru
      _
    // Predicated region
    $region14: #{tpu_custom_call.1} parent=1 // pred_check
      _
    $region15: #{tpu_custom_call.1} parent=1 // pred_check_branch
      %27 = sbr.rel (0) target = $region17
    $region16: #{tpu_custom_call.1} parent=1 // pred_region
      %28 = dma.done [#allocation3], 128
    $region17: #{tpu_custom_call.1} parent=1 // pred_fallthru
      _
    %v29 = vld [vmem:[#allocation2] sm:$0xf]
    %v30 = vld [vmem:[#allocation2 + $0x4] sm:$0xf]
    %v31 = vunpack.c.l.bf16 %v29
    %v32 = vunpack.c.l.bf16 %v30
    %vm33 = vcmask 261120
    %v34 = vsel %vm33, %v31, 0.0
    %35 = vadd.xlane.f32.xlu0 %v34
    %v36 = vpop.xlane.xlu0 %35
    %v37 = vsel %vm33, %v32, 0.0
    %38 = vadd.xlane.f32.xlu0 %v37
    %v39 = vpop.xlane.xlu0 %38
    %v40 = vrcp.pop 32.0
    %v41 = vmul.f32 %v36, %v40
    %v42 = vmul.f32 %v39, %v40
    %v43 = vsub.f32 %v31, %v41
    %v44 = vsub.f32 %v32, %v42
    %v45 = vmul.f32 %v43, %v43
    %v46 = vmul.f32 %v44, %v44
    %v47 = vsel %vm33, %v45, 0.0
    %48 = vadd.xlane.f32.xlu0 %v47
    %v49 = vpop.xlane.xlu0 %48
    %v50 = vsel %vm33, %v46, 0.0
    %51 = vadd.xlane.f32.xlu0 %v50
    %v52 = vpop.xlane.xlu0 %51
    %v53 = vmul.f32 %v49, %v40
    %v54 = vmul.f32 %v52, %v40
    %v55 = vadd.f32 %v53, 1e-12
    %v56 = vadd.f32 %v54, 1e-12
    %v57 = vrsqrt.pop %v55
    %v58 = vrsqrt.pop %v56
    %v59 = vmul.f32 %v43, %v57
    %v60 = vmul.f32 %v44, %v58
    %v61 = vld [vmem:[%s1] sm:$0x1]
    %v63 = vlaneseq
    %v64 = vshrl.u32 %v63, 7
    %v65 = vsub.s32 0, %v64
    %v66 = vrot.slane %v61, %v65
    %v68 = vmul.f32 %v59, %v66
    %v69 = vmul.f32 %v60, %v66
    %v70 = vld [vmem:[%s2] sm:$0x1]
    %v72 = vlaneseq
    %v73 = vshrl.u32 %v72, 7
    %v74 = vsub.s32 0, %v73
    %v75 = vrot.slane %v70, %v74
    %v77 = vadd.f32 %v68, %v75
    %v78 = vadd.f32 %v69, %v75
    %v79 = vpack.c.bf16 %v78, %v77
    %v81 = vunpack.c.l.b16 %v79
    %v82 = vunpack.c.h.b16 %v79
    %v83 = vpack.c.b16 %v81, %v81
    %v84 = vpack.c.b16 %v82, %v82
    %vm87 = vcmask 257024
    %88 = vst.msk [vmem:[#allocation5] sm:$0xf] %vm87, %v83
    %89 = vst.msk [vmem:[#allocation5 + $0x4] sm:$0xf] %vm87, %v84
    // Predicated region
    $region18: #{tpu_custom_call.1} parent=1 // pred_check
      _
    $region19: #{tpu_custom_call.1} parent=1 // pred_check_branch
      %91 = sbr.rel (0) target = $region21
    $region20: #{tpu_custom_call.1} parent=1 // pred_region
      %s93 = ssub.s32 128, 128
      %94 = vsyncadd [#allocation4], %s93
      %s95 = sshll.u32 [#allocation5], 4
      %s96 = int_to_ptr.vmem [resolvable:$true] %s95
      %101 = dma.vmem_to_hbm [thread:$0]  %s96, 128, %s3, [#allocation4], 64, 64, 4
    $region21: #{tpu_custom_call.1} parent=1 // pred_fallthru
      _
    // Predicated region
    $region22: #{tpu_custom_call.1} parent=1 // pred_check
      _
    $region23: #{tpu_custom_call.1} parent=1 // pred_check_branch
      %103 = sbr.rel (0) target = $region25
    $region24: #{tpu_custom_call.1} parent=1 // pred_region
      %104 = dma.done [#allocation4], 128
    $region25: #{tpu_custom_call.1} parent=1 // pred_fallthru
      _
    %105 = vsyncpa [#allocation3], 1
    %106 = vsyncpa [#allocation4], 1

</llo_original>
